<compile_context>
chip_gen: v5e
topology: v5e:2x2
jax: 0.10.0
libtpu: 0.0.40
codegen_flags: <defaults>
</compile_context>

<pallas_src>
import jax
import jax.numpy as jnp
from jax import lax
from jax.experimental import pallas as pl
from jax.experimental.pallas import tpu as pltpu

LATENT_DIM = 8
H1, H2, H3, OUT = 16, 32, 64, 6
BN_EPS = 0.8
LEAK = 0.2


def _round_up(x, m):
    return (x + m - 1) // m * m


def _lrelu(x):
    # Equivalent to where(x > 0, x, LEAK*x) for 0 < LEAK < 1, one op fewer.
    return jnp.maximum(x, LEAK * x)


def _mm(w_ref, x, b_ref):
    # (out, in) @ (in, tile_b) -> (out, tile_b), lane-dense along batch.
    return jnp.dot(w_ref[...], x, preferred_element_type=jnp.float32) + b_ref[...]


def _make_single_tile_kernel(n_valid, tile_b):
    """Whole batch fits one lane-aligned tile: one pass, no phases."""
    inv_n = 1.0 / float(n_valid)
    has_pad = tile_b != n_valid

    def kernel(z_ref,
               w1_ref, b1_ref,
               w2_ref, b2_ref, g2_ref, be2_ref,
               w3_ref, b3_ref, g3_ref, be3_ref,
               w4_ref, b4_ref,
               o_ref):
        if has_pad:
            col = lax.broadcasted_iota(jnp.int32, (1, tile_b), 1)
            valid = col < n_valid

        def bn(a, g_ref, be_ref):
            am = jnp.where(valid, a, 0.0) if has_pad else a
            mu = jnp.sum(am, axis=1, keepdims=True) * inv_n
            var = jnp.sum(am * am, axis=1, keepdims=True) * inv_n - mu * mu
            s = g_ref[...] * lax.rsqrt(var + BN_EPS)     # EUP rsqrt
            t = be_ref[...] - mu * s
            return a * s + t                              # folded BN FMA

        h1 = _lrelu(_mm(w1_ref, z_ref[...], b1_ref))              # (16, tb)
        h2 = _lrelu(bn(_mm(w2_ref, h1, b2_ref), g2_ref, be2_ref))  # (32, tb)
        h3 = _lrelu(bn(_mm(w3_ref, h2, b3_ref), g3_ref, be3_ref))  # (64, tb)
        o_ref[...] = _mm(w4_ref, h3, b4_ref).astype(o_ref.dtype)   # (6, tb)

    return kernel


def _make_multitile_kernel(n_valid, tile_b, n_tiles, has_pad):
    """3-phase kernel with persistent VMEM activation caches (no recompute)."""
    inv_n = 1.0 / float(n_valid)
    last = n_tiles - 1

    def kernel(z_ref,
               w1_ref, b1_ref,
               w2_ref, b2_ref, g2_ref, be2_ref,
               w3_ref, b3_ref, g3_ref, be3_ref,
               w4_ref, b4_ref,
               o_ref,
               a2c_ref, a3c_ref,
               sum2_ref, ss2_ref, sum3_ref, ss3_ref,
               s2_ref, t2_ref, s3_ref, t3_ref):
        phase = pl.program_id(0)
        tile = pl.program_id(1)
        off = pl.multiple_of(tile * tile_b, tile_b)

        def accumulate(a, sum_ref, ss_ref):
            if has_pad:
                @pl.when(tile == last)
                def _():
                    col = off + lax.broadcasted_iota(jnp.int32, (1, tile_b), 1)
                    am = jnp.where(col < n_valid, a, 0.0)
                    sum_ref[...] += jnp.sum(am, axis=1, keepdims=True)
                    ss_ref[...] += jnp.sum(am * am, axis=1, keepdims=True)

                @pl.when(tile != last)
                def _():
                    sum_ref[...] += jnp.sum(a, axis=1, keepdims=True)
                    ss_ref[...] += jnp.sum(a * a, axis=1, keepdims=True)
            else:
                sum_ref[...] += jnp.sum(a, axis=1, keepdims=True)
                ss_ref[...] += jnp.sum(a * a, axis=1, keepdims=True)

        def finalize(sum_ref, ss_ref, g_ref, be_ref, s_ref, t_ref):
            mu = sum_ref[...] * inv_n
            var = ss_ref[...] * inv_n - mu * mu           # biased batch var
            s = g_ref[...] * lax.rsqrt(var + BN_EPS)
            s_ref[...] = s
            t_ref[...] = be_ref[...] - mu * s

        # ---- phase 0: z -> a2 (cached), accumulate BN2 stats -------------
        @pl.when(phase == 0)
        def _():
            @pl.when(tile == 0)
            def _():
                sum2_ref[...] = jnp.zeros_like(sum2_ref)
                ss2_ref[...] = jnp.zeros_like(ss2_ref)
                sum3_ref[...] = jnp.zeros_like(sum3_ref)
                ss3_ref[...] = jnp.zeros_like(ss3_ref)

            h1 = _lrelu(_mm(w1_ref, z_ref[...], b1_ref))           # (16, tb)
            a2 = _mm(w2_ref, h1, b2_ref)                           # (32, tb)
            a2c_ref[:, pl.ds(off, tile_b)] = a2
            accumulate(a2, sum2_ref, ss2_ref)

        # ---- phase 1: cached a2 -> a3 (cached), accumulate BN3 stats -----
        @pl.when(phase == 1)
        def _():
            @pl.when(tile == 0)
            def _():
                finalize(sum2_ref, ss2_ref, g2_ref, be2_ref, s2_ref, t2_ref)

            a2 = a2c_ref[:, pl.ds(off, tile_b)]
            h2 = _lrelu(a2 * s2_ref[...] + t2_ref[...])
            a3 = _mm(w3_ref, h2, b3_ref)                           # (64, tb)
            a3c_ref[:, pl.ds(off, tile_b)] = a3
            accumulate(a3, sum3_ref, ss3_ref)

        # ---- phase 2: cached a3 -> output ---------------------------------
        @pl.when(phase == 2)
        def _():
            @pl.when(tile == 0)
            def _():
                finalize(sum3_ref, ss3_ref, g3_ref, be3_ref, s3_ref, t3_ref)

            a3 = a3c_ref[:, pl.ds(off, tile_b)]
            h3 = _lrelu(a3 * s3_ref[...] + t3_ref[...])
            o_ref[...] = _mm(w4_ref, h3, b4_ref).astype(o_ref.dtype)

    return kernel


def init_params(key):
    """PyTorch-style default init; weights feature-major (out, in),
    biases / gamma / beta as (out, 1)."""
    def linear(key, fan_in, fan_out):
        kw, kb = jax.random.split(key)
        bound = 1.0 / (fan_in ** 0.5)
        w = jax.random.uniform(kw, (fan_out, fan_in), jnp.float32, -bound, bound)
        b = jax.random.uniform(kb, (fan_out, 1), jnp.float32, -bound, bound)
        return w, b

    k1, k2, k3, k4 = jax.random.split(key, 4)
    w1, b1 = linear(k1, LATENT_DIM, H1)
    w2, b2 = linear(k2, H1, H2)
    w3, b3 = linear(k3, H2, H3)
    w4, b4 = linear(k4, H3, OUT)
    g2 = jnp.ones((H2, 1), jnp.float32)
    be2 = jnp.zeros((H2, 1), jnp.float32)
    g3 = jnp.ones((H3, 1), jnp.float32)
    be3 = jnp.zeros((H3, 1), jnp.float32)
    return (w1, b1, w2, b2, g2, be2, w3, b3, g3, be3, w4, b4)


def generator_forward(z, params, max_tile_batch=4096):
    """z: (batch, latent_dim) like the PyTorch module; returns (batch, 6)."""
    batch = z.shape[0]
    assert z.shape[1] == LATENT_DIM

    tb = min(max_tile_batch, _round_up(batch, 128))    # lane-aligned batch tile
    b_pad = _round_up(batch, tb)
    n_tiles = b_pad // tb
    has_pad = b_pad != batch

    # feature-major, zero-padded along the batch (lane) axis
    z_fm = jnp.pad(z.T.astype(jnp.float32), ((0, 0), (0, b_pad - batch)))

    if n_tiles == 1:
        kernel = _make_single_tile_kernel(batch, tb)

        def resident(shape):
            return pl.BlockSpec(shape, lambda t: (0, 0))

        grid = (1,)
        in_specs = ([pl.BlockSpec((LATENT_DIM, tb), lambda t: (0, 0))]
                    + [resident(p.shape) for p in params])
        out_specs = pl.BlockSpec((OUT, tb), lambda t: (0, 0))
        scratch_shapes = []
        dims = ("arbitrary",)
        cache_bytes = 0
    else:
        kernel = _make_multitile_kernel(batch, tb, n_tiles, has_pad)

        def resident(shape):
            return pl.BlockSpec(shape, lambda p, t: (0, 0))

        grid = (3, n_tiles)
        # z only consumed in phase 0; collapse to block 0 afterwards (no re-stream).
        in_specs = ([pl.BlockSpec((LATENT_DIM, tb),
                                  lambda p, t: (0, jnp.where(p == 0, t, 0)))]
                    + [resident(p.shape) for p in params])
        # output only produced in phase 2; collapse to block 0 in phases 0/1 so
        # uninitialized output blocks are never written back to HBM.
        out_specs = pl.BlockSpec((OUT, tb),
                                 lambda p, t: (0, jnp.where(p == 2, t, 0)))
        scratch_shapes = [
            pltpu.VMEM((H2, b_pad), jnp.float32),   # a2 cache (pre-BN layer 2)
            pltpu.VMEM((H3, b_pad), jnp.float32),   # a3 cache (pre-BN layer 3)
            pltpu.VMEM((H2, 1), jnp.float32),       # sum   layer 2
            pltpu.VMEM((H2, 1), jnp.float32),       # sumsq layer 2
            pltpu.VMEM((H3, 1), jnp.float32),       # sum   layer 3
            pltpu.VMEM((H3, 1), jnp.float32),       # sumsq layer 3
            pltpu.VMEM((H2, 1), jnp.float32),       # folded BN2 scale
            pltpu.VMEM((H2, 1), jnp.float32),       # folded BN2 shift
            pltpu.VMEM((H3, 1), jnp.float32),       # folded BN3 scale
            pltpu.VMEM((H3, 1), jnp.float32),       # folded BN3 shift
        ]
        dims = ("arbitrary", "arbitrary")
        cache_bytes = (H2 + H3) * b_pad * 4

    # Raise the scoped VMEM limit only when needed; keep under v7x's 64 MiB.
    tile_bytes = 2 * (LATENT_DIM + 8) * tb * 4      # double-buffered z + out tiles
    vmem_need = cache_bytes + tile_bytes + (4 << 20)
    compiler_kwargs = {"dimension_semantics": dims}
    if vmem_need > (16 << 20):
        compiler_kwargs["vmem_limit_bytes"] = int(min(vmem_need + (8 << 20), 64 << 20))

    grid_spec = pltpu.PrefetchScalarGridSpec(
        num_scalar_prefetch=0,
        grid=grid,
        in_specs=in_specs,
        out_specs=out_specs,
        scratch_shapes=scratch_shapes,
    )

    out_fm = pl.pallas_call(
        kernel,
        out_shape=jax.ShapeDtypeStruct((OUT, b_pad), jnp.float32),
        grid_spec=grid_spec,
        compiler_params=pltpu.CompilerParams(**compiler_kwargs),
    )(z_fm, *params)

    return out_fm[:, :batch].T                    # back to (batch, 6)


def reference_forward(z, params):
    (w1, b1, w2, b2, g2, be2, w3, b3, g3, be3, w4, b4) = params

    def lrelu(x):
        return jnp.where(x > 0, x, LEAK * x)

    def bn(x, g, b):
        mu = jnp.mean(x, axis=0, keepdims=True)
        var = jnp.mean((x - mu) ** 2, axis=0, keepdims=True)
        return (x - mu) / jnp.sqrt(var + BN_EPS) * g.T + b.T

    h = lrelu(z @ w1.T + b1.T)
    h = lrelu(bn(h @ w2.T + b2.T, g2, be2))
    h = lrelu(bn(h @ w3.T + b3.T, g3, be3))
    return h @ w4.T + b4.T


if __name__ == "__main__":
    key = jax.random.PRNGKey(0)
    kz, kp = jax.random.split(key)
    params = init_params(kp)

    # --- single-tile fast path (common GAN batch) -------------------------
    batch = 8
    z = jax.random.normal(kz, (batch, LATENT_DIM), jnp.float32)
    out = jax.block_until_ready(generator_forward(z, params))
    ref = reference_forward(z, params)
    assert out.shape == (batch, OUT), out.shape
    assert jnp.allclose(out, ref, atol=1e-4, rtol=1e-4), "single-tile mismatch"

    # --- multi-tile 3-phase path (forced small tile to exercise it) -------
    batch2 = 300
    z2 = jax.random.normal(jax.random.fold_in(kz, 1), (batch2, LATENT_DIM),
                           jnp.float32)
    out2 = jax.block_until_ready(
        generator_forward(z2, params, max_tile_batch=128))
    ref2 = reference_forward(z2, params)
    assert out2.shape == (batch2, OUT), out2.shape
    assert jnp.allclose(out2, ref2, atol=1e-4, rtol=1e-4), "multi-tile mismatch"

    print("KERNEL_OK")
</pallas_src>

<mosaic_0001>
module attributes {stable_mosaic.version = 11 : i64} {
  func.func @kernel(%arg0: i32, %arg1: memref<8x128xf32, #tpu.memory_space<vmem>>, %arg2: memref<16x8xf32, #tpu.memory_space<vmem>>, %arg3: memref<16x1xf32, #tpu.memory_space<vmem>>, %arg4: memref<32x16xf32, #tpu.memory_space<vmem>>, %arg5: memref<32x1xf32, #tpu.memory_space<vmem>>, %arg6: memref<32x1xf32, #tpu.memory_space<vmem>>, %arg7: memref<32x1xf32, #tpu.memory_space<vmem>>, %arg8: memref<64x32xf32, #tpu.memory_space<vmem>>, %arg9: memref<64x1xf32, #tpu.memory_space<vmem>>, %arg10: memref<64x1xf32, #tpu.memory_space<vmem>>, %arg11: memref<64x1xf32, #tpu.memory_space<vmem>>, %arg12: memref<6x64xf32, #tpu.memory_space<vmem>>, %arg13: memref<6x1xf32, #tpu.memory_space<vmem>>, %arg14: memref<6x128xf32, #tpu.memory_space<vmem>>) attributes {dimension_semantics = [#tpu.dimension_semantics<arbitrary>], iteration_bounds = array<i64: 1>, scalar_prefetch = 0 : i64, scratch_operands = 0 : i64, tpu.core_type = #tpu.core_type<tc>, window_params = [{pipeline_mode = #tpu.pipeline_mode<synchronous>, transform_indices = @transform_0, window_bounds = array<i64: 8, 128>}, {pipeline_mode = #tpu.pipeline_mode<synchronous>, transform_indices = @transform_1, window_bounds = array<i64: 16, 8>}, {pipeline_mode = #tpu.pipeline_mode<synchronous>, transform_indices = @transform_2, window_bounds = array<i64: 16, 1>}, {pipeline_mode = #tpu.pipeline_mode<synchronous>, transform_indices = @transform_3, window_bounds = array<i64: 32, 16>}, {pipeline_mode = #tpu.pipeline_mode<synchronous>, transform_indices = @transform_4, window_bounds = array<i64: 32, 1>}, {pipeline_mode = #tpu.pipeline_mode<synchronous>, transform_indices = @transform_5, window_bounds = array<i64: 32, 1>}, {pipeline_mode = #tpu.pipeline_mode<synchronous>, transform_indices = @transform_6, window_bounds = array<i64: 32, 1>}, {pipeline_mode = #tpu.pipeline_mode<synchronous>, transform_indices = @transform_7, window_bounds = array<i64: 64, 32>}, {pipeline_mode = #tpu.pipeline_mode<synchronous>, transform_indices = @transform_8, window_bounds = array<i64: 64, 1>}, {pipeline_mode = #tpu.pipeline_mode<synchronous>, transform_indices = @transform_9, window_bounds = array<i64: 64, 1>}, {pipeline_mode = #tpu.pipeline_mode<synchronous>, transform_indices = @transform_10, window_bounds = array<i64: 64, 1>}, {pipeline_mode = #tpu.pipeline_mode<synchronous>, transform_indices = @transform_11, window_bounds = array<i64: 6, 64>}, {pipeline_mode = #tpu.pipeline_mode<synchronous>, transform_indices = @transform_12, window_bounds = array<i64: 6, 1>}, {pipeline_mode = #tpu.pipeline_mode<synchronous>, transform_indices = @transform_13, window_bounds = array<i64: 6, 128>}]} {
    %0 = tpu.iota {dimensions = array<i32: 1>} : vector<1x128xi32>
    %c8_i32 = arith.constant 8 : i32
    %1 = vector.broadcast %c8_i32 : i32 to vector<1x128xi32>
    %2 = arith.cmpi slt, %0, %1 : vector<1x128xi32>
    %c0 = arith.constant 0 : index
    %c0_0 = arith.constant 0 : index
    %3 = vector.load %arg1[%c0, %c0_0] : memref<8x128xf32, #tpu.memory_space<vmem>>, vector<8x128xf32>
    %c0_1 = arith.constant 0 : index
    %c0_2 = arith.constant 0 : index
    %4 = vector.load %arg2[%c0_1, %c0_2] : memref<16x8xf32, #tpu.memory_space<vmem>>, vector<16x8xf32>
    %cst = arith.constant dense<0.000000e+00> : vector<16x128xf32>
    %5 = tpu.matmul %4, %3, %cst {dimension_numbers = #tpu.dot_dimension_numbers<[1], [0], [0], [1], [0, 0, 1, 1], [], []>} : vector<16x8xf32>, vector<8x128xf32>, vector<16x128xf32> -> vector<16x128xf32>
    %c0_3 = arith.constant 0 : index
    %c0_4 = arith.constant 0 : index
    %6 = vector.load %arg3[%c0_3, %c0_4] : memref<16x1xf32, #tpu.memory_space<vmem>>, vector<16x1xf32>
    %7 = vector.broadcast %6 : vector<16x1xf32> to vector<16x128xf32>
    %8 = arith.addf %5, %7 : vector<16x128xf32>
    %cst_5 = arith.constant 2.000000e-01 : f32
    %9 = vector.broadcast %cst_5 : f32 to vector<16x128xf32>
    %10 = arith.mulf %9, %8 : vector<16x128xf32>
    %11 = arith.maximumf %8, %10 : vector<16x128xf32>
    %c0_6 = arith.constant 0 : index
    %c0_7 = arith.constant 0 : index
    %12 = vector.load %arg4[%c0_6, %c0_7] : memref<32x16xf32, #tpu.memory_space<vmem>>, vector<32x16xf32>
    %cst_8 = arith.constant dense<0.000000e+00> : vector<32x128xf32>
    %13 = tpu.matmul %12, %11, %cst_8 {dimension_numbers = #tpu.dot_dimension_numbers<[1], [0], [0], [1], [0, 0, 1, 1], [], []>} : vector<32x16xf32>, vector<16x128xf32>, vector<32x128xf32> -> vector<32x128xf32>
    %c0_9 = arith.constant 0 : index
    %c0_10 = arith.constant 0 : index
    %14 = vector.load %arg5[%c0_9, %c0_10] : memref<32x1xf32, #tpu.memory_space<vmem>>, vector<32x1xf32>
    %15 = vector.broadcast %14 : vector<32x1xf32> to vector<32x128xf32>
    %16 = arith.addf %13, %15 : vector<32x128xf32>
    %cst_11 = arith.constant 0.000000e+00 : f32
    %17 = vector.shape_cast %2 : vector<1x128xi1> to vector<1x128xi1>
    %18 = vector.broadcast %17 : vector<1x128xi1> to vector<32x128xi1>
    %19 = vector.broadcast %cst_11 : f32 to vector<32x128xf32>
    %20 = arith.select %18, %16, %19 : vector<32x128xi1>, vector<32x128xf32>
    %cst_12 = arith.constant dense<0.000000e+00> : vector<32xf32>
    %21 = vector.multi_reduction <add>, %20, %cst_12 [1] : vector<32x128xf32> to vector<32xf32>
    %22 = vector.shape_cast %21 : vector<32xf32> to vector<32x1xf32>
    %cst_13 = arith.constant 1.250000e-01 : f32
    %23 = vector.broadcast %cst_13 : f32 to vector<32x1xf32>
    %24 = arith.mulf %22, %23 : vector<32x1xf32>
    %25 = arith.mulf %20, %20 : vector<32x128xf32>
    %cst_14 = arith.constant dense<0.000000e+00> : vector<32xf32>
    %26 = vector.multi_reduction <add>, %25, %cst_14 [1] : vector<32x128xf32> to vector<32xf32>
    %27 = vector.shape_cast %26 : vector<32xf32> to vector<32x1xf32>
    %cst_15 = arith.constant 1.250000e-01 : f32
    %28 = vector.broadcast %cst_15 : f32 to vector<32x1xf32>
    %29 = arith.mulf %27, %28 : vector<32x1xf32>
    %30 = arith.mulf %24, %24 : vector<32x1xf32>
    %31 = arith.subf %29, %30 : vector<32x1xf32>
    %c0_16 = arith.constant 0 : index
    %c0_17 = arith.constant 0 : index
    %32 = vector.load %arg6[%c0_16, %c0_17] : memref<32x1xf32, #tpu.memory_space<vmem>>, vector<32x1xf32>
    %cst_18 = arith.constant 8.000000e-01 : f32
    %33 = vector.broadcast %cst_18 : f32 to vector<32x1xf32>
    %34 = arith.addf %31, %33 : vector<32x1xf32>
    %35 = math.rsqrt %34 : vector<32x1xf32>
    %36 = arith.mulf %32, %35 : vector<32x1xf32>
    %c0_19 = arith.constant 0 : index
    %c0_20 = arith.constant 0 : index
    %37 = vector.load %arg7[%c0_19, %c0_20] : memref<32x1xf32, #tpu.memory_space<vmem>>, vector<32x1xf32>
    %38 = arith.mulf %24, %36 : vector<32x1xf32>
    %39 = arith.subf %37, %38 : vector<32x1xf32>
    %40 = vector.broadcast %36 : vector<32x1xf32> to vector<32x128xf32>
    %41 = arith.mulf %16, %40 : vector<32x128xf32>
    %42 = vector.broadcast %39 : vector<32x1xf32> to vector<32x128xf32>
    %43 = arith.addf %41, %42 : vector<32x128xf32>
    %cst_21 = arith.constant 2.000000e-01 : f32
    %44 = vector.broadcast %cst_21 : f32 to vector<32x128xf32>
    %45 = arith.mulf %44, %43 : vector<32x128xf32>
    %46 = arith.maximumf %43, %45 : vector<32x128xf32>
    %c0_22 = arith.constant 0 : index
    %c0_23 = arith.constant 0 : index
    %47 = vector.load %arg8[%c0_22, %c0_23] : memref<64x32xf32, #tpu.memory_space<vmem>>, vector<64x32xf32>
    %cst_24 = arith.constant dense<0.000000e+00> : vector<64x128xf32>
    %48 = tpu.matmul %47, %46, %cst_24 {dimension_numbers = #tpu.dot_dimension_numbers<[1], [0], [0], [1], [0, 0, 1, 1], [], []>} : vector<64x32xf32>, vector<32x128xf32>, vector<64x128xf32> -> vector<64x128xf32>
    %c0_25 = arith.constant 0 : index
    %c0_26 = arith.constant 0 : index
    %49 = vector.load %arg9[%c0_25, %c0_26] : memref<64x1xf32, #tpu.memory_space<vmem>>, vector<64x1xf32>
    %50 = vector.broadcast %49 : vector<64x1xf32> to vector<64x128xf32>
    %51 = arith.addf %48, %50 : vector<64x128xf32>
    %cst_27 = arith.constant 0.000000e+00 : f32
    %52 = vector.shape_cast %2 : vector<1x128xi1> to vector<1x128xi1>
    %53 = vector.broadcast %52 : vector<1x128xi1> to vector<64x128xi1>
    %54 = vector.broadcast %cst_27 : f32 to vector<64x128xf32>
    %55 = arith.select %53, %51, %54 : vector<64x128xi1>, vector<64x128xf32>
    %cst_28 = arith.constant dense<0.000000e+00> : vector<64xf32>
    %56 = vector.multi_reduction <add>, %55, %cst_28 [1] : vector<64x128xf32> to vector<64xf32>
    %57 = vector.shape_cast %56 : vector<64xf32> to vector<64x1xf32>
    %cst_29 = arith.constant 1.250000e-01 : f32
    %58 = vector.broadcast %cst_29 : f32 to vector<64x1xf32>
    %59 = arith.mulf %57, %58 : vector<64x1xf32>
    %60 = arith.mulf %55, %55 : vector<64x128xf32>
    %cst_30 = arith.constant dense<0.000000e+00> : vector<64xf32>
    %61 = vector.multi_reduction <add>, %60, %cst_30 [1] : vector<64x128xf32> to vector<64xf32>
    %62 = vector.shape_cast %61 : vector<64xf32> to vector<64x1xf32>
    %cst_31 = arith.constant 1.250000e-01 : f32
    %63 = vector.broadcast %cst_31 : f32 to vector<64x1xf32>
    %64 = arith.mulf %62, %63 : vector<64x1xf32>
    %65 = arith.mulf %59, %59 : vector<64x1xf32>
    %66 = arith.subf %64, %65 : vector<64x1xf32>
    %c0_32 = arith.constant 0 : index
    %c0_33 = arith.constant 0 : index
    %67 = vector.load %arg10[%c0_32, %c0_33] : memref<64x1xf32, #tpu.memory_space<vmem>>, vector<64x1xf32>
    %cst_34 = arith.constant 8.000000e-01 : f32
    %68 = vector.broadcast %cst_34 : f32 to vector<64x1xf32>
    %69 = arith.addf %66, %68 : vector<64x1xf32>
    %70 = math.rsqrt %69 : vector<64x1xf32>
    %71 = arith.mulf %67, %70 : vector<64x1xf32>
    %c0_35 = arith.constant 0 : index
    %c0_36 = arith.constant 0 : index
    %72 = vector.load %arg11[%c0_35, %c0_36] : memref<64x1xf32, #tpu.memory_space<vmem>>, vector<64x1xf32>
    %73 = arith.mulf %59, %71 : vector<64x1xf32>
    %74 = arith.subf %72, %73 : vector<64x1xf32>
    %75 = vector.broadcast %71 : vector<64x1xf32> to vector<64x128xf32>
    %76 = arith.mulf %51, %75 : vector<64x128xf32>
    %77 = vector.broadcast %74 : vector<64x1xf32> to vector<64x128xf32>
    %78 = arith.addf %76, %77 : vector<64x128xf32>
    %cst_37 = arith.constant 2.000000e-01 : f32
    %79 = vector.broadcast %cst_37 : f32 to vector<64x128xf32>
    %80 = arith.mulf %79, %78 : vector<64x128xf32>
    %81 = arith.maximumf %78, %80 : vector<64x128xf32>
    %c0_38 = arith.constant 0 : index
    %c0_39 = arith.constant 0 : index
    %82 = vector.load %arg12[%c0_38, %c0_39] : memref<6x64xf32, #tpu.memory_space<vmem>>, vector<6x64xf32>
    %cst_40 = arith.constant dense<0.000000e+00> : vector<6x128xf32>
    %83 = tpu.matmul %82, %81, %cst_40 {dimension_numbers = #tpu.dot_dimension_numbers<[1], [0], [0], [1], [0, 0, 1, 1], [], []>} : vector<6x64xf32>, vector<64x128xf32>, vector<6x128xf32> -> vector<6x128xf32>
    %c0_41 = arith.constant 0 : index
    %c0_42 = arith.constant 0 : index
    %84 = vector.load %arg13[%c0_41, %c0_42] : memref<6x1xf32, #tpu.memory_space<vmem>>, vector<6x1xf32>
    %85 = vector.broadcast %84 : vector<6x1xf32> to vector<6x128xf32>
    %86 = arith.addf %83, %85 : vector<6x128xf32>
    %c0_43 = arith.constant 0 : index
    %c0_44 = arith.constant 0 : index
    %87 = vector.load %arg14[%c0_43, %c0_44] : memref<6x128xf32, #tpu.memory_space<vmem>>, vector<6x128xf32>
    tpu.vector_store %arg14[%c0_43, %c0_44], %86 {strides = array<i32>} : memref<6x128xf32, #tpu.memory_space<vmem>>, vector<6x128xf32>,
    return
  }
  func.func @transform_0(%arg0: i32) -> (i32, i32) {
    %c0_i32 = arith.constant 0 : i32
    %c0_i32_0 = arith.constant 0 : i32
    %c0_i32_1 = arith.constant 0 : i32
    return %c0_i32, %c0_i32_0 : i32, i32
  }
  func.func @transform_1(%arg0: i32) -> (i32, i32) {
    %c0_i32 = arith.constant 0 : i32
    %c0_i32_0 = arith.constant 0 : i32
    %c0_i32_1 = arith.constant 0 : i32
    return %c0_i32, %c0_i32_0 : i32, i32
  }
  func.func @transform_2(%arg0: i32) -> (i32, i32) {
    %c0_i32 = arith.constant 0 : i32
    %c0_i32_0 = arith.constant 0 : i32
    %c0_i32_1 = arith.constant 0 : i32
    return %c0_i32, %c0_i32_0 : i32, i32
  }
  func.func @transform_3(%arg0: i32) -> (i32, i32) {
    %c0_i32 = arith.constant 0 : i32
    %c0_i32_0 = arith.constant 0 : i32
    %c0_i32_1 = arith.constant 0 : i32
    return %c0_i32, %c0_i32_0 : i32, i32
  }
  func.func @transform_4(%arg0: i32) -> (i32, i32) {
    %c0_i32 = arith.constant 0 : i32
    %c0_i32_0 = arith.constant 0 : i32
    %c0_i32_1 = arith.constant 0 : i32
    return %c0_i32, %c0_i32_0 : i32, i32
  }
  func.func @transform_5(%arg0: i32) -> (i32, i32) {
    %c0_i32 = arith.constant 0 : i32
    %c0_i32_0 = arith.constant 0 : i32
    %c0_i32_1 = arith.constant 0 : i32
    return %c0_i32, %c0_i32_0 : i32, i32
  }
  func.func @transform_6(%arg0: i32) -> (i32, i32) {
    %c0_i32 = arith.constant 0 : i32
    %c0_i32_0 = arith.constant 0 : i32
    %c0_i32_1 = arith.constant 0 : i32
    return %c0_i32, %c0_i32_0 : i32, i32
  }
  func.func @transform_7(%arg0: i32) -> (i32, i32) {
    %c0_i32 = arith.constant 0 : i32
    %c0_i32_0 = arith.constant 0 : i32
    %c0_i32_1 = arith.constant 0 : i32
    return %c0_i32, %c0_i32_0 : i32, i32
  }
  func.func @transform_8(%arg0: i32) -> (i32, i32) {
    %c0_i32 = arith.constant 0 : i32
    %c0_i32_0 = arith.constant 0 : i32
    %c0_i32_1 = arith.constant 0 : i32
    return %c0_i32, %c0_i32_0 : i32, i32
  }
  func.func @transform_9(%arg0: i32) -> (i32, i32) {
    %c0_i32 = arith.constant 0 : i32
    %c0_i32_0 = arith.constant 0 : i32
    %c0_i32_1 = arith.constant 0 : i32
    return %c0_i32, %c0_i32_0 : i32, i32
  }
  func.func @transform_10(%arg0: i32) -> (i32, i32) {
    %c0_i32 = arith.constant 0 : i32
    %c0_i32_0 = arith.constant 0 : i32
    %c0_i32_1 = arith.constant 0 : i32
    return %c0_i32, %c0_i32_0 : i32, i32
  }
  func.func @transform_11(%arg0: i32) -> (i32, i32) {
    %c0_i32 = arith.constant 0 : i32
    %c0_i32_0 = arith.constant 0 : i32
    %c0_i32_1 = arith.constant 0 : i32
    return %c0_i32, %c0_i32_0 : i32, i32
  }
  func.func @transform_12(%arg0: i32) -> (i32, i32) {
    %c0_i32 = arith.constant 0 : i32
    %c0_i32_0 = arith.constant 0 : i32
    %c0_i32_1 = arith.constant 0 : i32
    return %c0_i32, %c0_i32_0 : i32, i32
  }
  func.func @transform_13(%arg0: i32) -> (i32, i32) {
    %c0_i32 = arith.constant 0 : i32
    %c0_i32_0 = arith.constant 0 : i32
    %c0_i32_1 = arith.constant 0 : i32
    return %c0_i32, %c0_i32_0 : i32, i32
  }
}

</mosaic_0001>

<llo_original>
// kernel: tpu_custom_call.1
$region0: #{tpu_custom_call.1}
  #allocation0 [shape = 'u32[]', space=smem, size = 0x4, offset = 0x4, fixed_abs, tag = 'smem constant byte address 0x4 - core index']
  #allocation1 [shape = 'u32[72,128]{1,0:T(1,128)}', space=vmem, size = 0x9000, scoped, tag = 'internal scratch']
  %s0 = inlined_call_operand.vmem [shape: f32[8,128], index: 0, kind: input, shape index: {}]
  %s1 = inlined_call_operand.vmem [shape: f32[16,8], index: 1, kind: input, shape index: {}]
  %s2 = inlined_call_operand.vmem [shape: f32[16,1], index: 2, kind: input, shape index: {}]
  %s3 = inlined_call_operand.vmem [shape: f32[32,16], index: 3, kind: input, shape index: {}]
  %s4 = inlined_call_operand.vmem [shape: f32[32,1], index: 4, kind: input, shape index: {}]
  %s5 = inlined_call_operand.vmem [shape: f32[32,1], index: 5, kind: input, shape index: {}]
  %s6 = inlined_call_operand.vmem [shape: f32[32,1], index: 6, kind: input, shape index: {}]
  %s7 = inlined_call_operand.vmem [shape: f32[64,32], index: 7, kind: input, shape index: {}]
  %s8 = inlined_call_operand.vmem [shape: f32[64,1], index: 8, kind: input, shape index: {}]
  %s9 = inlined_call_operand.vmem [shape: f32[64,1], index: 9, kind: input, shape index: {}]
  %s10 = inlined_call_operand.vmem [shape: f32[64,1], index: 10, kind: input, shape index: {}]
  %s11 = inlined_call_operand.vmem [shape: f32[6,64], index: 11, kind: input, shape index: {}]
  %s12 = inlined_call_operand.vmem [shape: f32[6,1], index: 12, kind: input, shape index: {}]
  %s13 = inlined_call_operand.hbm [shape: f32[6,128], index: 13, kind: output, shape index: {}]
  %s14 = sld [smem:[#allocation0]]
  $region62: #{tpu_custom_call.1} parent=0
    _
  %s16 = ssub.s32 1, %s14
  %s17 = scalar_select 0, %s16, %s14
  $region1: #{tpu_custom_call.1} parent=0
    #allocation2 [shape = 'u8[4096]{0}', space=vmem, size = 0x1000, scoped, tag = 'output window, operand 0, single buffered']
    #allocation3 [shape = 's32[1]{0}', space=sflag, size = 0x4, scoped, tag = 'scoped memory for tpu_custom_call.1']
    %18 = vsyncpa [#allocation3], 0
    // Predicated region
    $region2: #{tpu_custom_call.1} parent=1 // pred_check
      _
    $region3: #{tpu_custom_call.1} parent=1 // pred_check_branch
      %20 = sbr.rel (0) target = $region5
    $region4: #{tpu_custom_call.1} parent=1 // pred_region
      _
    $region5: #{tpu_custom_call.1} parent=1 // pred_fallthru
      _
    // Predicated region
    $region6: #{tpu_custom_call.1} parent=1 // pred_check
      _
    $region7: #{tpu_custom_call.1} parent=1 // pred_check_branch
      %22 = sbr.rel (0) target = $region9
    $region8: #{tpu_custom_call.1} parent=1 // pred_region
      _
    $region9: #{tpu_custom_call.1} parent=1 // pred_fallthru
      _
    // Predicated region
    $region10: #{tpu_custom_call.1} parent=1 // pred_check
      _
    $region11: #{tpu_custom_call.1} parent=1 // pred_check_branch
      %24 = sbr.rel (0) target = $region13
    $region12: #{tpu_custom_call.1} parent=1 // pred_region
      _
    $region13: #{tpu_custom_call.1} parent=1 // pred_fallthru
      _
    // Predicated region
    $region14: #{tpu_custom_call.1} parent=1 // pred_check
      _
    $region15: #{tpu_custom_call.1} parent=1 // pred_check_branch
      %26 = sbr.rel (0) target = $region17
    $region16: #{tpu_custom_call.1} parent=1 // pred_region
      _
    $region17: #{tpu_custom_call.1} parent=1 // pred_fallthru
      _
    // Predicated region
    $region18: #{tpu_custom_call.1} parent=1 // pred_check
      _
    $region19: #{tpu_custom_call.1} parent=1 // pred_check_branch
      %28 = sbr.rel (0) target = $region21
    $region20: #{tpu_custom_call.1} parent=1 // pred_region
      _
    $region21: #{tpu_custom_call.1} parent=1 // pred_fallthru
      _
    // Predicated region
    $region22: #{tpu_custom_call.1} parent=1 // pred_check
      _
    $region23: #{tpu_custom_call.1} parent=1 // pred_check_branch
      %30 = sbr.rel (0) target = $region25
    $region24: #{tpu_custom_call.1} parent=1 // pred_region
      _
    $region25: #{tpu_custom_call.1} parent=1 // pred_fallthru
      _
    // Predicated region
    $region26: #{tpu_custom_call.1} parent=1 // pred_check
      _
    $region27: #{tpu_custom_call.1} parent=1 // pred_check_branch
      %32 = sbr.rel (0) target = $region29
    $region28: #{tpu_custom_call.1} parent=1 // pred_region
      _
    $region29: #{tpu_custom_call.1} parent=1 // pred_fallthru
      _
    // Predicated region
    $region30: #{tpu_custom_call.1} parent=1 // pred_check
      _
    $region31: #{tpu_custom_call.1} parent=1 // pred_check_branch
      %34 = sbr.rel (0) target = $region33
    $region32: #{tpu_custom_call.1} parent=1 // pred_region
      _
    $region33: #{tpu_custom_call.1} parent=1 // pred_fallthru
      _
    // Predicated region
    $region34: #{tpu_custom_call.1} parent=1 // pred_check
      _
    $region35: #{tpu_custom_call.1} parent=1 // pred_check_branch
      %36 = sbr.rel (0) target = $region37
    $region36: #{tpu_custom_call.1} parent=1 // pred_region
      _
    $region37: #{tpu_custom_call.1} parent=1 // pred_fallthru
      _
    // Predicated region
    $region38: #{tpu_custom_call.1} parent=1 // pred_check
      _
    $region39: #{tpu_custom_call.1} parent=1 // pred_check_branch
      %38 = sbr.rel (0) target = $region41
    $region40: #{tpu_custom_call.1} parent=1 // pred_region
      _
    $region41: #{tpu_custom_call.1} parent=1 // pred_fallthru
      _
    // Predicated region
    $region42: #{tpu_custom_call.1} parent=1 // pred_check
      _
    $region43: #{tpu_custom_call.1} parent=1 // pred_check_branch
      %40 = sbr.rel (0) target = $region45
    $region44: #{tpu_custom_call.1} parent=1 // pred_region
      _
    $region45: #{tpu_custom_call.1} parent=1 // pred_fallthru
      _
    // Predicated region
    $region46: #{tpu_custom_call.1} parent=1 // pred_check
      _
    $region47: #{tpu_custom_call.1} parent=1 // pred_check_branch
      %42 = sbr.rel (0) target = $region49
    $region48: #{tpu_custom_call.1} parent=1 // pred_region
      _
    $region49: #{tpu_custom_call.1} parent=1 // pred_fallthru
      _
    // Predicated region
    $region50: #{tpu_custom_call.1} parent=1 // pred_check
      _
    $region51: #{tpu_custom_call.1} parent=1 // pred_check_branch
      %44 = sbr.rel (0) target = $region53
    $region52: #{tpu_custom_call.1} parent=1 // pred_region
      _
    $region53: #{tpu_custom_call.1} parent=1 // pred_fallthru
      _
    %v45 = vlaneseq
    %v46 = vand.u32 %v45, 127
    %vm47 = vcmp.lt.s32.totalorder %v46, 8
    %v48 = vld [vmem:[%s0] sm:$0xff]
    %v49 = vld [vmem:[%s1] sm:$0xff]
    %v50 = vld [vmem:[%s1 + $0x8] sm:$0xff]
    %v51 = vld [vmem:[%s2] sm:$0xff]
    %v52 = vld [vmem:[%s2 + $0x8] sm:$0xff]
    %54 = vset.pattern.permute.xlu0 0
    %55 = vperm.xlu0 %54, %v51
    %v56 = vpop.permute.xlu0 %55
    %59 = vset.pattern.permute.xlu0 0
    %60 = vperm.xlu0 %59, %v52
    %v61 = vpop.permute.xlu0 %60
    %vm63 = vcmask 64512
    %v65 = vsel %vm63, %v49, 0
    %v68 = vsel %vm63, %v50, 0
    %70 = vmatpush.msra.mxu0 0.0
    %71 = vmatpush.msra.mxu0 0.0
    %72 = vmatpush.msra.mxu0 0.0
    %73 = vmatpush.msra.mxu0 0.0
    %74 = vmatpush.msra.mxu0 0.0
    %75 = vmatpush.msra.mxu0 0.0
    %76 = vmatpush.msra.mxu0 0.0
    %77 = vmatpush.msra.mxu0 0.0
    %78 = vmatpush.msra.mxu0 0.0
    %79 = vmatpush.msra.mxu0 0.0
    %80 = vmatpush.msra.mxu0 0.0
    %81 = vmatpush.msra.mxu0 0.0
    %82 = vmatpush.msra.mxu0 0.0
    %83 = vmatpush.msra.mxu0 0.0
    %84 = vmatpush.msra.mxu0 0.0
    %85 = vmatpush.msra.mxu0 %v48
    %86 = vmatmul.f32.gmra.mxu0 %v65
    %v87 = vpop.f32.mrf.mxu0
    %v88 = vadd.f32 %v56, %v87
    %89 = vmatmul.f32.gmra.mxu0 %v68
    %v90 = vpop.f32.mrf.mxu0
    %v91 = vadd.f32 %v61, %v90
    %92 = vdwg.mxu0
    %v93 = vmul.f32 %v88, 0.2
    %v94 = vmul.f32 %v91, 0.2
    %v95 = vmax.f32 %v88, %v93
    %v96 = vmax.f32 %v91, %v94
    %v97 = vld [vmem:[%s3] sm:$0xff]
    %v98 = vld [vmem:[%s3 + $0x8] sm:$0xff]
    %v99 = vld [vmem:[%s3 + $0x10] sm:$0xff]
    %v100 = vld [vmem:[%s3 + $0x18] sm:$0xff]
    %v101 = vld [vmem:[%s4] sm:$0xff]
    %v102 = vld [vmem:[%s4 + $0x8] sm:$0xff]
    %v103 = vld [vmem:[%s4 + $0x10] sm:$0xff]
    %v104 = vld [vmem:[%s4 + $0x18] sm:$0xff]
    %106 = vset.pattern.permute.xlu0 0
    %107 = vperm.xlu0 %106, %v101
    %v108 = vpop.permute.xlu0 %107
    %111 = vset.pattern.permute.xlu0 0
    %112 = vperm.xlu0 %111, %v102
    %v113 = vpop.permute.xlu0 %112
    %116 = vset.pattern.permute.xlu0 0
    %117 = vperm.xlu0 %116, %v103
    %v118 = vpop.permute.xlu0 %117
    %121 = vset.pattern.permute.xlu0 0
    %122 = vperm.xlu0 %121, %v104
    %v123 = vpop.permute.xlu0 %122
    %vm125 = vcmask 130048
    %v127 = vsel %vm125, %v97, 0
    %v130 = vsel %vm125, %v98, 0
    %v133 = vsel %vm125, %v99, 0
    %v136 = vsel %vm125, %v100, 0
    %138 = vmatpush.msra.mxu0 0.0
    %139 = vmatpush.msra.mxu0 0.0
    %140 = vmatpush.msra.mxu0 0.0
    %141 = vmatpush.msra.mxu0 0.0
    %142 = vmatpush.msra.mxu0 0.0
    %143 = vmatpush.msra.mxu0 0.0
    %144 = vmatpush.msra.mxu0 0.0
    %145 = vmatpush.msra.mxu0 0.0
    %146 = vmatpush.msra.mxu0 0.0
    %147 = vmatpush.msra.mxu0 0.0
    %148 = vmatpush.msra.mxu0 0.0
    %149 = vmatpush.msra.mxu0 0.0
    %150 = vmatpush.msra.mxu0 0.0
    %151 = vmatpush.msra.mxu0 0.0
    %152 = vmatpush.msra.mxu0 %v96
    %153 = vmatpush.msra.mxu0 %v95
    %154 = vmatmul.f32.gmra.mxu0 %v127
    %v155 = vpop.f32.mrf.mxu0
    %v156 = vadd.f32 %v108, %v155
    %157 = vmatmul.f32.gmra.mxu0 %v130
    %v158 = vpop.f32.mrf.mxu0
    %v159 = vadd.f32 %v113, %v158
    %160 = vmatmul.f32.gmra.mxu0 %v133
    %v161 = vpop.f32.mrf.mxu0
    %v162 = vadd.f32 %v118, %v161
    %163 = vmatmul.f32.gmra.mxu0 %v136
    %v164 = vpop.f32.mrf.mxu0
    %v165 = vadd.f32 %v123, %v164
    %166 = vdwg.mxu0
    %v167 = vsel %vm47, 1, 0
    %vm168 = vcmp.eq.s32.totalorder %v167, 1
    %v169 = vsel %vm168, %v156, 0.0
    %v170 = vsel %vm168, %v159, 0.0
    %v171 = vsel %vm168, %v162, 0.0
    %v172 = vsel %vm168, %v165, 0.0
    %173 = vadd.xlane.f32.xlu0 %v169
    %v174 = vpop.xlane.xlu0 %173
    %175 = vadd.xlane.f32.xlu0 %v170
    %v176 = vpop.xlane.xlu0 %175
    %177 = vadd.xlane.f32.xlu0 %v171
    %v178 = vpop.xlane.xlu0 %177
    %179 = vadd.xlane.f32.xlu0 %v172
    %v180 = vpop.xlane.xlu0 %179
    %v181 = vmul.f32 %v174, 0.125
    %v182 = vmul.f32 %v176, 0.125
    %v183 = vmul.f32 %v178, 0.125
    %v184 = vmul.f32 %v180, 0.125
    %v185 = vmul.f32 %v169, %v169
    %v186 = vmul.f32 %v170, %v170
    %v187 = vmul.f32 %v171, %v171
    %v188 = vmul.f32 %v172, %v172
    %189 = vadd.xlane.f32.xlu0 %v185
    %v190 = vpop.xlane.xlu0 %189
    %191 = vadd.xlane.f32.xlu0 %v186
    %v192 = vpop.xlane.xlu0 %191
    %193 = vadd.xlane.f32.xlu0 %v187
    %v194 = vpop.xlane.xlu0 %193
    %195 = vadd.xlane.f32.xlu0 %v188
    %v196 = vpop.xlane.xlu0 %195
    %v197 = vmul.f32 %v190, 0.125
    %v198 = vmul.f32 %v192, 0.125
    %v199 = vmul.f32 %v194, 0.125
    %v200 = vmul.f32 %v196, 0.125
    %v201 = vmul.f32 %v181, %v181
    %v202 = vmul.f32 %v182, %v182
    %v203 = vmul.f32 %v183, %v183
    %v204 = vmul.f32 %v184, %v184
    %v205 = vsub.f32 %v197, %v201
    %v206 = vsub.f32 %v198, %v202
    %v207 = vsub.f32 %v199, %v203
    %v208 = vsub.f32 %v200, %v204
    %v209 = vld [vmem:[%s5] sm:$0xff]
    %v210 = vld [vmem:[%s5 + $0x8] sm:$0xff]
    %v211 = vld [vmem:[%s5 + $0x10] sm:$0xff]
    %v212 = vld [vmem:[%s5 + $0x18] sm:$0xff]
    %v213 = vadd.f32 %v205, 0.8
    %v214 = vadd.f32 %v206, 0.8
    %v215 = vadd.f32 %v207, 0.8
    %v216 = vadd.f32 %v208, 0.8
    %v217 = vrsqrt.pop %v213
    %v218 = vmul.f32 %v217, %v213
    %v219 = vmul.f32 %v218, %v217
    %v220 = vmul.f32 0.5, %v219
    %v221 = vsub.f32 1.5, %v220
    %v222 = vmul.f32 %v217, %v221
    %vm223 = vweird.f32 %v213
    %vm224 = vweird.f32 %v217
    %vm225 = vmor %vm223, %vm224
    %v226 = vsel %vm225, %v217, %v222
    %v227 = vrsqrt.pop %v214
    %v228 = vmul.f32 %v227, %v214
    %v229 = vmul.f32 %v228, %v227
    %v230 = vmul.f32 0.5, %v229
    %v231 = vsub.f32 1.5, %v230
    %v232 = vmul.f32 %v227, %v231
    %vm233 = vweird.f32 %v214
    %vm234 = vweird.f32 %v227
    %vm235 = vmor %vm233, %vm234
    %v236 = vsel %vm235, %v227, %v232
    %v237 = vrsqrt.pop %v215
    %v238 = vmul.f32 %v237, %v215
    %v239 = vmul.f32 %v238, %v237
    %v240 = vmul.f32 0.5, %v239
    %v241 = vsub.f32 1.5, %v240
    %v242 = vmul.f32 %v237, %v241
    %vm243 = vweird.f32 %v215
    %vm244 = vweird.f32 %v237
    %vm245 = vmor %vm243, %vm244
    %v246 = vsel %vm245, %v237, %v242
    %v247 = vrsqrt.pop %v216
    %v248 = vmul.f32 %v247, %v216
    %v249 = vmul.f32 %v248, %v247
    %v250 = vmul.f32 0.5, %v249
    %v251 = vsub.f32 1.5, %v250
    %v252 = vmul.f32 %v247, %v251
    %vm253 = vweird.f32 %v216
    %vm254 = vweird.f32 %v247
    %vm255 = vmor %vm253, %vm254
    %v256 = vsel %vm255, %v247, %v252
    %v257 = vmul.f32 %v209, %v226
    %v258 = vmul.f32 %v210, %v236
    %v259 = vmul.f32 %v211, %v246
    %v260 = vmul.f32 %v212, %v256
    %v261 = vld [vmem:[%s6] sm:$0xff]
    %v262 = vld [vmem:[%s6 + $0x8] sm:$0xff]
    %v263 = vld [vmem:[%s6 + $0x10] sm:$0xff]
    %v264 = vld [vmem:[%s6 + $0x18] sm:$0xff]
    %v265 = vmul.f32 %v181, %v257
    %v266 = vmul.f32 %v182, %v258
    %v267 = vmul.f32 %v183, %v259
    %v268 = vmul.f32 %v184, %v260
    %v269 = vsub.f32 %v261, %v265
    %v270 = vsub.f32 %v262, %v266
    %v271 = vsub.f32 %v263, %v267
    %v272 = vsub.f32 %v264, %v268
    %274 = vset.pattern.permute.xlu0 0
    %275 = vperm.xlu0 %274, %v257
    %v276 = vpop.permute.xlu0 %275
    %279 = vset.pattern.permute.xlu0 0
    %280 = vperm.xlu0 %279, %v258
    %v281 = vpop.permute.xlu0 %280
    %284 = vset.pattern.permute.xlu0 0
    %285 = vperm.xlu0 %284, %v259
    %v286 = vpop.permute.xlu0 %285
    %289 = vset.pattern.permute.xlu0 0
    %290 = vperm.xlu0 %289, %v260
    %v291 = vpop.permute.xlu0 %290
    %v293 = vmul.f32 %v156, %v276
    %v294 = vmul.f32 %v159, %v281
    %v295 = vmul.f32 %v162, %v286
    %v296 = vmul.f32 %v165, %v291
    %298 = vset.pattern.permute.xlu0 0
    %299 = vperm.xlu0 %298, %v269
    %v300 = vpop.permute.xlu0 %299
    %303 = vset.pattern.permute.xlu0 0
    %304 = vperm.xlu0 %303, %v270
    %v305 = vpop.permute.xlu0 %304
    %308 = vset.pattern.permute.xlu0 0
    %309 = vperm.xlu0 %308, %v271
    %v310 = vpop.permute.xlu0 %309
    %313 = vset.pattern.permute.xlu0 0
    %314 = vperm.xlu0 %313, %v272
    %v315 = vpop.permute.xlu0 %314
    %v317 = vadd.f32 %v293, %v300
    %v318 = vadd.f32 %v294, %v305
    %v319 = vadd.f32 %v295, %v310
    %v320 = vadd.f32 %v296, %v315
    %v321 = vmul.f32 %v317, 0.2
    %v322 = vmul.f32 %v318, 0.2
    %v323 = vmul.f32 %v319, 0.2
    %v324 = vmul.f32 %v320, 0.2
    %v325 = vmax.f32 %v317, %v321
    %v326 = vmax.f32 %v318, %v322
    %v327 = vmax.f32 %v319, %v323
    %v328 = vmax.f32 %v320, %v324
    %v329 = vld [vmem:[%s7] sm:$0xff]
    %v330 = vld [vmem:[%s7 + $0x8] sm:$0xff]
    %v331 = vld [vmem:[%s7 + $0x10] sm:$0xff]
    %v332 = vld [vmem:[%s7 + $0x18] sm:$0xff]
    %v333 = vld [vmem:[%s7 + $0x20] sm:$0xff]
    %v334 = vld [vmem:[%s7 + $0x28] sm:$0xff]
    %v335 = vld [vmem:[%s7 + $0x30] sm:$0xff]
    %v336 = vld [vmem:[%s7 + $0x38] sm:$0xff]
    %v337 = vld [vmem:[%s8] sm:$0xff]
    %v338 = vld [vmem:[%s8 + $0x8] sm:$0xff]
    %v339 = vld [vmem:[%s8 + $0x10] sm:$0xff]
    %v340 = vld [vmem:[%s8 + $0x18] sm:$0xff]
    %v341 = vld [vmem:[%s8 + $0x20] sm:$0xff]
    %v342 = vld [vmem:[%s8 + $0x28] sm:$0xff]
    %v343 = vld [vmem:[%s8 + $0x30] sm:$0xff]
    %v344 = vld [vmem:[%s8 + $0x38] sm:$0xff]
    %346 = vset.pattern.permute.xlu0 0
    %347 = vperm.xlu0 %346, %v337
    %v348 = vpop.permute.xlu0 %347
    %351 = vset.pattern.permute.xlu0 0
    %352 = vperm.xlu0 %351, %v338
    %v353 = vpop.permute.xlu0 %352
    %356 = vset.pattern.permute.xlu0 0
    %357 = vperm.xlu0 %356, %v339
    %v358 = vpop.permute.xlu0 %357
    %361 = vset.pattern.permute.xlu0 0
    %362 = vperm.xlu0 %361, %v340
    %v363 = vpop.permute.xlu0 %362
    %366 = vset.pattern.permute.xlu0 0
    %367 = vperm.xlu0 %366, %v341
    %v368 = vpop.permute.xlu0 %367
    %371 = vset.pattern.permute.xlu0 0
    %372 = vperm.xlu0 %371, %v342
    %v373 = vpop.permute.xlu0 %372
    %376 = vset.pattern.permute.xlu0 0
    %377 = vperm.xlu0 %376, %v343
    %v378 = vpop.permute.xlu0 %377
    %381 = vset.pattern.permute.xlu0 0
    %382 = vperm.xlu0 %381, %v344
    %v383 = vpop.permute.xlu0 %382
    %vm385 = vcmask 261120
    %v387 = vsel %vm385, %v329, 0
    %v390 = vsel %vm385, %v330, 0
    %v393 = vsel %vm385, %v331, 0
    %v396 = vsel %vm385, %v332, 0
    %v399 = vsel %vm385, %v333, 0
    %v402 = vsel %vm385, %v334, 0
    %v405 = vsel %vm385, %v335, 0
    %v408 = vsel %vm385, %v336, 0
    %410 = vmatpush.msra.mxu0 0.0
    %411 = vmatpush.msra.mxu0 0.0
    %412 = vmatpush.msra.mxu0 0.0
    %413 = vmatpush.msra.mxu0 0.0
    %414 = vmatpush.msra.mxu0 0.0
    %415 = vmatpush.msra.mxu0 0.0
    %416 = vmatpush.msra.mxu0 0.0
    %417 = vmatpush.msra.mxu0 0.0
    %418 = vmatpush.msra.mxu0 0.0
    %419 = vmatpush.msra.mxu0 0.0
    %420 = vmatpush.msra.mxu0 0.0
    %421 = vmatpush.msra.mxu0 0.0
    %422 = vmatpush.msra.mxu0 %v328
    %423 = vmatpush.msra.mxu0 %v327
    %424 = vmatpush.msra.mxu0 %v326
    %425 = vmatpush.msra.mxu0 %v325
    %426 = vmatmul.f32.gmra.mxu0 %v387
    %v427 = vpop.f32.mrf.mxu0
    %v428 = vadd.f32 %v348, %v427
    %429 = vmatmul.f32.gmra.mxu0 %v390
    %v430 = vpop.f32.mrf.mxu0
    %v431 = vadd.f32 %v353, %v430
    %432 = vmatmul.f32.gmra.mxu0 %v393
    %v433 = vpop.f32.mrf.mxu0
    %v434 = vadd.f32 %v358, %v433
    %435 = vmatmul.f32.gmra.mxu0 %v396
    %v436 = vpop.f32.mrf.mxu0
    %v437 = vadd.f32 %v363, %v436
    %438 = vmatmul.f32.gmra.mxu0 %v399
    %v439 = vpop.f32.mrf.mxu0
    %v440 = vadd.f32 %v368, %v439
    %441 = vmatmul.f32.gmra.mxu0 %v402
    %v442 = vpop.f32.mrf.mxu0
    %v443 = vadd.f32 %v373, %v442
    %444 = vmatmul.f32.gmra.mxu0 %v405
    %v445 = vpop.f32.mrf.mxu0
    %v446 = vadd.f32 %v378, %v445
    %447 = vmatmul.f32.gmra.mxu0 %v408
    %v448 = vpop.f32.mrf.mxu0
    %v449 = vadd.f32 %v383, %v448
    %450 = vdwg.mxu0
    %v451 = vsel %vm168, %v428, 0.0
    %v452 = vsel %vm168, %v431, 0.0
    %v453 = vsel %vm168, %v434, 0.0
    %v454 = vsel %vm168, %v437, 0.0
    %v455 = vsel %vm168, %v440, 0.0
    %v456 = vsel %vm168, %v443, 0.0
    %v457 = vsel %vm168, %v446, 0.0
    %v458 = vsel %vm168, %v449, 0.0
    %459 = vadd.xlane.f32.xlu0 %v451
    %v460 = vpop.xlane.xlu0 %459
    %461 = vadd.xlane.f32.xlu0 %v452
    %v462 = vpop.xlane.xlu0 %461
    %463 = vadd.xlane.f32.xlu0 %v453
    %v464 = vpop.xlane.xlu0 %463
    %465 = vadd.xlane.f32.xlu0 %v454
    %v466 = vpop.xlane.xlu0 %465
    %467 = vadd.xlane.f32.xlu0 %v455
    %v468 = vpop.xlane.xlu0 %467
    %469 = vadd.xlane.f32.xlu0 %v456
    %v470 = vpop.xlane.xlu0 %469
    %471 = vadd.xlane.f32.xlu0 %v457
    %v472 = vpop.xlane.xlu0 %471
    %473 = vadd.xlane.f32.xlu0 %v458
    %v474 = vpop.xlane.xlu0 %473
    %v475 = vmul.f32 %v460, 0.125
    %v476 = vmul.f32 %v462, 0.125
    %v477 = vmul.f32 %v464, 0.125
    %v478 = vmul.f32 %v466, 0.125
    %v479 = vmul.f32 %v468, 0.125
    %v480 = vmul.f32 %v470, 0.125
    %v481 = vmul.f32 %v472, 0.125
    %v482 = vmul.f32 %v474, 0.125
    %v483 = vmul.f32 %v451, %v451
    %v484 = vmul.f32 %v452, %v452
    %v485 = vmul.f32 %v453, %v453
    %v486 = vmul.f32 %v454, %v454
    %v487 = vmul.f32 %v455, %v455
    %v488 = vmul.f32 %v456, %v456
    %v489 = vmul.f32 %v457, %v457
    %v490 = vmul.f32 %v458, %v458
    %491 = vadd.xlane.f32.xlu0 %v483
    %v492 = vpop.xlane.xlu0 %491
    %493 = vadd.xlane.f32.xlu0 %v484
    %v494 = vpop.xlane.xlu0 %493
    %495 = vadd.xlane.f32.xlu0 %v485
    %v496 = vpop.xlane.xlu0 %495
    %497 = vadd.xlane.f32.xlu0 %v486
    %v498 = vpop.xlane.xlu0 %497
    %499 = vadd.xlane.f32.xlu0 %v487
    %v500 = vpop.xlane.xlu0 %499
    %501 = vadd.xlane.f32.xlu0 %v488
    %v502 = vpop.xlane.xlu0 %501
    %503 = vadd.xlane.f32.xlu0 %v489
    %v504 = vpop.xlane.xlu0 %503
    %505 = vadd.xlane.f32.xlu0 %v490
    %v506 = vpop.xlane.xlu0 %505
    %v507 = vmul.f32 %v492, 0.125
    %v508 = vmul.f32 %v494, 0.125
    %v509 = vmul.f32 %v496, 0.125
    %v510 = vmul.f32 %v498, 0.125
    %v511 = vmul.f32 %v500, 0.125
    %v512 = vmul.f32 %v502, 0.125
    %v513 = vmul.f32 %v504, 0.125
    %v514 = vmul.f32 %v506, 0.125
    %v515 = vmul.f32 %v475, %v475
    %v516 = vmul.f32 %v476, %v476
    %v517 = vmul.f32 %v477, %v477
    %v518 = vmul.f32 %v478, %v478
    %v519 = vmul.f32 %v479, %v479
    %v520 = vmul.f32 %v480, %v480
    %v521 = vmul.f32 %v481, %v481
    %v522 = vmul.f32 %v482, %v482
    %v523 = vsub.f32 %v507, %v515
    %v524 = vsub.f32 %v508, %v516
    %v525 = vsub.f32 %v509, %v517
    %v526 = vsub.f32 %v510, %v518
    %v527 = vsub.f32 %v511, %v519
    %v528 = vsub.f32 %v512, %v520
    %v529 = vsub.f32 %v513, %v521
    %v530 = vsub.f32 %v514, %v522
    %v531 = vld [vmem:[%s9] sm:$0xff]
    %v532 = vld [vmem:[%s9 + $0x8] sm:$0xff]
    %v533 = vld [vmem:[%s9 + $0x10] sm:$0xff]
    %v534 = vld [vmem:[%s9 + $0x18] sm:$0xff]
    %v535 = vld [vmem:[%s9 + $0x20] sm:$0xff]
    %v536 = vld [vmem:[%s9 + $0x28] sm:$0xff]
    %v537 = vld [vmem:[%s9 + $0x30] sm:$0xff]
    %v538 = vld [vmem:[%s9 + $0x38] sm:$0xff]
    %v539 = vadd.f32 %v523, 0.8
    %v540 = vadd.f32 %v524, 0.8
    %v541 = vadd.f32 %v525, 0.8
    %v542 = vadd.f32 %v526, 0.8
    %v543 = vadd.f32 %v527, 0.8
    %v544 = vadd.f32 %v528, 0.8
    %v545 = vadd.f32 %v529, 0.8
    %v546 = vadd.f32 %v530, 0.8
    %v547 = vrsqrt.pop %v539
    %v548 = vmul.f32 %v547, %v539
    %v549 = vmul.f32 %v548, %v547
    %v550 = vmul.f32 0.5, %v549
    %v551 = vsub.f32 1.5, %v550
    %v552 = vmul.f32 %v547, %v551
    %vm553 = vweird.f32 %v539
    %vm554 = vweird.f32 %v547
    %vm555 = vmor %vm553, %vm554
    %v556 = vsel %vm555, %v547, %v552
    %v557 = vrsqrt.pop %v540
    %v558 = vmul.f32 %v557, %v540
    %v559 = vmul.f32 %v558, %v557
    %v560 = vmul.f32 0.5, %v559
    %v561 = vsub.f32 1.5, %v560
    %v562 = vmul.f32 %v557, %v561
    %vm563 = vweird.f32 %v540
    %vm564 = vweird.f32 %v557
    %vm565 = vmor %vm563, %vm564
    %v566 = vsel %vm565, %v557, %v562
    %v567 = vrsqrt.pop %v541
    %v568 = vmul.f32 %v567, %v541
    %v569 = vmul.f32 %v568, %v567
    %v570 = vmul.f32 0.5, %v569
    %v571 = vsub.f32 1.5, %v570
    %v572 = vmul.f32 %v567, %v571
    %vm573 = vweird.f32 %v541
    %vm574 = vweird.f32 %v567
    %vm575 = vmor %vm573, %vm574
    %v576 = vsel %vm575, %v567, %v572
    %v577 = vrsqrt.pop %v542
    %v578 = vmul.f32 %v577, %v542
    %v579 = vmul.f32 %v578, %v577
    %v580 = vmul.f32 0.5, %v579
    %v581 = vsub.f32 1.5, %v580
    %v582 = vmul.f32 %v577, %v581
    %vm583 = vweird.f32 %v542
    %vm584 = vweird.f32 %v577
    %vm585 = vmor %vm583, %vm584
    %v586 = vsel %vm585, %v577, %v582
    %v587 = vrsqrt.pop %v543
    %v588 = vmul.f32 %v587, %v543
    %v589 = vmul.f32 %v588, %v587
    %v590 = vmul.f32 0.5, %v589
    %v591 = vsub.f32 1.5, %v590
    %v592 = vmul.f32 %v587, %v591
    %vm593 = vweird.f32 %v543
    %vm594 = vweird.f32 %v587
    %vm595 = vmor %vm593, %vm594
    %v596 = vsel %vm595, %v587, %v592
    %v597 = vrsqrt.pop %v544
    %v598 = vmul.f32 %v597, %v544
    %v599 = vmul.f32 %v598, %v597
    %v600 = vmul.f32 0.5, %v599
    %v601 = vsub.f32 1.5, %v600
    %v602 = vmul.f32 %v597, %v601
    %vm603 = vweird.f32 %v544
    %vm604 = vweird.f32 %v597
    %vm605 = vmor %vm603, %vm604
    %v606 = vsel %vm605, %v597, %v602
    %v607 = vrsqrt.pop %v545
    %v608 = vmul.f32 %v607, %v545
    %v609 = vmul.f32 %v608, %v607
    %v610 = vmul.f32 0.5, %v609
    %v611 = vsub.f32 1.5, %v610
    %v612 = vmul.f32 %v607, %v611
    %vm613 = vweird.f32 %v545
    %vm614 = vweird.f32 %v607
    %vm615 = vmor %vm613, %vm614
    %v616 = vsel %vm615, %v607, %v612
    %v617 = vrsqrt.pop %v546
    %v618 = vmul.f32 %v617, %v546
    %v619 = vmul.f32 %v618, %v617
    %v620 = vmul.f32 0.5, %v619
    %v621 = vsub.f32 1.5, %v620
    %v622 = vmul.f32 %v617, %v621
    %vm623 = vweird.f32 %v546
    %vm624 = vweird.f32 %v617
    %vm625 = vmor %vm623, %vm624
    %v626 = vsel %vm625, %v617, %v622
    %v627 = vmul.f32 %v531, %v556
    %v628 = vmul.f32 %v532, %v566
    %v629 = vmul.f32 %v533, %v576
    %v630 = vmul.f32 %v534, %v586
    %v631 = vmul.f32 %v535, %v596
    %v632 = vmul.f32 %v536, %v606
    %v633 = vmul.f32 %v537, %v616
    %v634 = vmul.f32 %v538, %v626
    %v635 = vld [vmem:[%s10] sm:$0xff]
    %v636 = vld [vmem:[%s10 + $0x8] sm:$0xff]
    %v637 = vld [vmem:[%s10 + $0x10] sm:$0xff]
    %v638 = vld [vmem:[%s10 + $0x18] sm:$0xff]
    %v639 = vld [vmem:[%s10 + $0x20] sm:$0xff]
    %v640 = vld [vmem:[%s10 + $0x28] sm:$0xff]
    %v641 = vld [vmem:[%s10 + $0x30] sm:$0xff]
    %v642 = vld [vmem:[%s10 + $0x38] sm:$0xff]
    %v643 = vmul.f32 %v475, %v627
    %v644 = vmul.f32 %v476, %v628
    %v645 = vmul.f32 %v477, %v629
    %v646 = vmul.f32 %v478, %v630
    %v647 = vmul.f32 %v479, %v631
    %v648 = vmul.f32 %v480, %v632
    %v649 = vmul.f32 %v481, %v633
    %v650 = vmul.f32 %v482, %v634
    %v651 = vsub.f32 %v635, %v643
    %v652 = vsub.f32 %v636, %v644
    %v653 = vsub.f32 %v637, %v645
    %v654 = vsub.f32 %v638, %v646
    %v655 = vsub.f32 %v639, %v647
    %v656 = vsub.f32 %v640, %v648
    %v657 = vsub.f32 %v641, %v649
    %v658 = vsub.f32 %v642, %v650
    %660 = vset.pattern.permute.xlu0 0
    %661 = vperm.xlu0 %660, %v627
    %v662 = vpop.permute.xlu0 %661
    %665 = vset.pattern.permute.xlu0 0
    %666 = vperm.xlu0 %665, %v628
    %v667 = vpop.permute.xlu0 %666
    %670 = vset.pattern.permute.xlu0 0
    %671 = vperm.xlu0 %670, %v629
    %v672 = vpop.permute.xlu0 %671
    %675 = vset.pattern.permute.xlu0 0
    %676 = vperm.xlu0 %675, %v630
    %v677 = vpop.permute.xlu0 %676
    %680 = vset.pattern.permute.xlu0 0
    %681 = vperm.xlu0 %680, %v631
    %v682 = vpop.permute.xlu0 %681
    %685 = vset.pattern.permute.xlu0 0
    %686 = vperm.xlu0 %685, %v632
    %v687 = vpop.permute.xlu0 %686
    %690 = vset.pattern.permute.xlu0 0
    %691 = vperm.xlu0 %690, %v633
    %v692 = vpop.permute.xlu0 %691
    %695 = vset.pattern.permute.xlu0 0
    %696 = vperm.xlu0 %695, %v634
    %v697 = vpop.permute.xlu0 %696
    %v699 = vmul.f32 %v428, %v662
    %v700 = vmul.f32 %v431, %v667
    %v701 = vmul.f32 %v434, %v672
    %v702 = vmul.f32 %v437, %v677
    %v703 = vmul.f32 %v440, %v682
    %v704 = vmul.f32 %v443, %v687
    %v705 = vmul.f32 %v446, %v692
    %v706 = vmul.f32 %v449, %v697
    %708 = vset.pattern.permute.xlu0 0
    %709 = vperm.xlu0 %708, %v651
    %v710 = vpop.permute.xlu0 %709
    %713 = vset.pattern.permute.xlu0 0
    %714 = vperm.xlu0 %713, %v652
    %v715 = vpop.permute.xlu0 %714
    %718 = vset.pattern.permute.xlu0 0
    %719 = vperm.xlu0 %718, %v653
    %v720 = vpop.permute.xlu0 %719
    %723 = vset.pattern.permute.xlu0 0
    %724 = vperm.xlu0 %723, %v654
    %v725 = vpop.permute.xlu0 %724
    %728 = vset.pattern.permute.xlu0 0
    %729 = vperm.xlu0 %728, %v655
    %v730 = vpop.permute.xlu0 %729
    %733 = vset.pattern.permute.xlu0 0
    %734 = vperm.xlu0 %733, %v656
    %v735 = vpop.permute.xlu0 %734
    %738 = vset.pattern.permute.xlu0 0
    %739 = vperm.xlu0 %738, %v657
    %v740 = vpop.permute.xlu0 %739
    %743 = vset.pattern.permute.xlu0 0
    %744 = vperm.xlu0 %743, %v658
    %v745 = vpop.permute.xlu0 %744
    %v747 = vadd.f32 %v699, %v710
    %v748 = vadd.f32 %v700, %v715
    %v749 = vadd.f32 %v701, %v720
    %v750 = vadd.f32 %v702, %v725
    %v751 = vadd.f32 %v703, %v730
    %v752 = vadd.f32 %v704, %v735
    %v753 = vadd.f32 %v705, %v740
    %v754 = vadd.f32 %v706, %v745
    %v755 = vmul.f32 %v747, 0.2
    %v756 = vmul.f32 %v748, 0.2
    %v757 = vmul.f32 %v749, 0.2
    %v758 = vmul.f32 %v750, 0.2
    %v759 = vmul.f32 %v751, 0.2
    %v760 = vmul.f32 %v752, 0.2
    %v761 = vmul.f32 %v753, 0.2
    %v762 = vmul.f32 %v754, 0.2
    %v763 = vmax.f32 %v747, %v755
    %v764 = vmax.f32 %v748, %v756
    %v765 = vmax.f32 %v749, %v757
    %v766 = vmax.f32 %v750, %v758
    %v767 = vmax.f32 %v751, %v759
    %v768 = vmax.f32 %v752, %v760
    %v769 = vmax.f32 %v753, %v761
    %v770 = vmax.f32 %v754, %v762
    %v771 = vld [vmem:[%s11] sm:$0x3f]
    %v772 = vld [vmem:[%s12] sm:$0x3f]
    %774 = vset.pattern.permute.xlu0 0
    %775 = vperm.xlu0 %774, %v772
    %v776 = vpop.permute.xlu0 %775
    %vm778 = vcmask 523264
    %v780 = vsel %vm778, %v771, 0
    %782 = vmatpush.msra.mxu0 0.0
    %783 = vmatpush.msra.mxu0 0.0
    %784 = vmatpush.msra.mxu0 0.0
    %785 = vmatpush.msra.mxu0 0.0
    %786 = vmatpush.msra.mxu0 0.0
    %787 = vmatpush.msra.mxu0 0.0
    %788 = vmatpush.msra.mxu0 0.0
    %789 = vmatpush.msra.mxu0 0.0
    %790 = vmatpush.msra.mxu0 %v770
    %791 = vmatpush.msra.mxu0 %v769
    %792 = vmatpush.msra.mxu0 %v768
    %793 = vmatpush.msra.mxu0 %v767
    %794 = vmatpush.msra.mxu0 %v766
    %795 = vmatpush.msra.mxu0 %v765
    %796 = vmatpush.msra.mxu0 %v764
    %797 = vmatpush.msra.mxu0 %v763
    %798 = vmatmul.f32.gmra.mxu0 %v780
    %v799 = vpop.f32.mrf.mxu0
    %v800 = vadd.f32 %v776, %v799
    %801 = vdwg.mxu0
    %802 = vst [vmem:[#allocation2] sm:$0x3f] %v800
    // Predicated region
    $region54: #{tpu_custom_call.1} parent=1 // pred_check
      _
    $region55: #{tpu_custom_call.1} parent=1 // pred_check_branch
      %804 = sbr.rel (0) target = $region57
    $region56: #{tpu_custom_call.1} parent=1 // pred_region
      %806 = vsyncadd [#allocation3], 0
      %s808 = sshll.u32 [#allocation2], 4
      %s809 = int_to_ptr.vmem [resolvable:$true] %s808
      %s810 = sshll.u32 %s13, 4
      %s811 = int_to_ptr.hbm [resolvable:$true] %s810
      %813 = dma.vmem_to_hbm [thread:$0]  %s809, 128, %s811, [#allocation3]
    $region57: #{tpu_custom_call.1} parent=1 // pred_fallthru
      _
    // Predicated region
    $region58: #{tpu_custom_call.1} parent=1 // pred_check
      _
    $region59: #{tpu_custom_call.1} parent=1 // pred_check_branch
      %815 = sbr.rel (0) target = $region61
    $region60: #{tpu_custom_call.1} parent=1 // pred_region
      %817 = dma.done [#allocation3], 128
    $region61: #{tpu_custom_call.1} parent=1 // pred_fallthru
      _
    %818 = vsyncpa [#allocation3], 1

</llo_original>
